<compile_context>
chip_gen: v7x
topology: tpu7x:2x2x1
jax: 0.10.0
libtpu: 0.0.40
codegen_flags: <defaults>
</compile_context>

<pallas_src>
import jax
import jax.numpy as jnp
from jax.experimental import pallas as pl
from jax.experimental.pallas import tpu as pltpu

P_DEFAULT = 0.5
MIN_FACTOR = 0.5
MAX_FACTOR = 1.5

_LUMA_R = 0.299
_LUMA_G = 0.587
_LUMA_B = 0.114


def _pad8(n: int) -> int:
    return ((n + 7) // 8) * 8


def _largest_aligned_divisor(hw: int, cap: int) -> int:
    """Largest d with d % 128 == 0, hw % d == 0 and d <= cap (hw must be a multiple of 128)."""
    cap = max(128, min(cap, hw))
    best = 128
    for d in range(128, cap + 1, 128):
        if hw % d == 0:
            best = d
    return best


def _tpu_budgets():
    """(target_block_bytes, vmem_limit_bytes) sized per TPU generation."""
    try:
        vmem_cap = int(pltpu.get_tpu_info().vmem_capacity_bytes)
    except Exception:
        vmem_cap = 64 * 1024 * 1024            # conservative default: v7x per-TC VMEM
    if vmem_cap >= 100 * 1024 * 1024:          # v5e / v6e (128 MiB physical VMEM)
        target_block_bytes = 8 * 1024 * 1024
    else:                                      # v7x (64 MiB VMEM per TensorCore)
        target_block_bytes = 5 * 1024 * 1024
    vmem_limit = min(4 * target_block_bytes + 8 * 1024 * 1024,
                     max(vmem_cap - 16 * 1024 * 1024, 32 * 1024 * 1024))
    return target_block_bytes, int(vmem_limit)


# --------------------------------------------------------------------------------------
# Fused single-pass kernel (whole image(s) per block): mean + blend in one HBM pass.
# --------------------------------------------------------------------------------------
def _contrast_fused_kernel(factor_ref, x_ref, o_ref):
    # factor_ref: SMEM (1,) f32 scalar-prefetch
    f = factor_ref[0]
    x = x_ref[...]                                 # (B, C*H*W) flattened images
    hw = x.shape[-1] // 3

    # Channel views are static, 128-aligned lane slices (offsets 0, HW, 2*HW).
    # Per-channel sums go to the XLU; the luma weighting is applied to the (B,1) sums,
    # keeping per-element VPU work to the blend itself.
    r_sum = jnp.sum(x[:, 0:hw], axis=-1, keepdims=True)
    g_sum = jnp.sum(x[:, hw:2 * hw], axis=-1, keepdims=True)
    b_sum = jnp.sum(x[:, 2 * hw:3 * hw], axis=-1, keepdims=True)
    gray_sum = _LUMA_R * r_sum + _LUMA_G * g_sum + _LUMA_B * b_sum
    mean = jnp.round(gray_sum / float(hw))         # (B, 1) per-image rounded gray mean

    offset = (1.0 - f) * mean                      # hoisted: out = clip(x*f + offset)
    o_ref[...] = jnp.clip(x * f + offset, 0.0, 255.0)


# --------------------------------------------------------------------------------------
# Two-pass path for images too large to keep a whole image in an 8-sublane VMEM block.
# --------------------------------------------------------------------------------------
def _make_mean_kernel(tile_f: int, hw: int):
    def _mean_kernel(x_ref, mean_ref, acc_ref):
        j = pl.program_id(1)

        @pl.when(j == 0)
        def _():
            acc_ref[...] = jnp.zeros_like(acc_ref)

        # Chunks are channel-aligned (tile_f divides HW), so one scalar luma weight/chunk.
        ch = (j * tile_f) // hw
        w = jnp.where(ch == 0, _LUMA_R, jnp.where(ch == 1, _LUMA_G, _LUMA_B))
        acc_ref[...] += w * jnp.sum(x_ref[...], axis=-1, keepdims=True)

        @pl.when(j == pl.num_programs(1) - 1)
        def _():
            mean_ref[...] = jnp.round(acc_ref[...] / float(hw))

    return _mean_kernel


def _blend_kernel(factor_ref, mean_ref, x_ref, o_ref):
    f = factor_ref[0]
    offset = (1.0 - f) * mean_ref[...]             # (B, 1) per-image offset
    o_ref[...] = jnp.clip(x_ref[...] * f + offset, 0.0, 255.0)


# --------------------------------------------------------------------------------------
# Wrapper
# --------------------------------------------------------------------------------------
def contrast(x, factor, apply_flag, *, _force_two_pass: bool = False):
    """x: (N, 3, H, W) float32 in [0, 255]; factor, apply_flag: scalars."""
    N, C, H, W = x.shape
    assert C == 3, "Contrast expects RGB images (C == 3)"
    assert x.dtype == jnp.float32, "Contrast kernel expects float32 pixels in [0, 255]"
    HW = H * W
    CHW = C * HW
    # Channel slices (offsets 0, HW, 2*HW) and CHW chunking must stay lane-aligned.
    # TODO(synk): pad/mask HW to a multiple of 128 to support arbitrary spatial sizes.
    assert HW % 128 == 0, "H*W must be a multiple of 128 for lane-aligned channel slices"

    target_block_bytes, vmem_limit = _tpu_budgets()
    bytes_per_px = 4                               # float32
    per_image_bytes = CHW * bytes_per_px

    x2 = x.reshape(N, CHW)                         # lane-dense flattened view
    factor_arr = jnp.reshape(jnp.asarray(factor, jnp.float32), (1,))

    # Fused-path block sizing: B is always either the whole batch or a multiple of 8,
    # so the sublane dim of every VMEM tile is fully populated.
    B = None
    if not _force_two_pass:
        if _pad8(N) * per_image_bytes <= target_block_bytes:
            B = N
        elif 8 * per_image_bytes <= target_block_bytes:
            B = ((target_block_bytes // per_image_bytes) // 8) * 8
    # NOTE: on v7x an explicit even batch split (CORE_PARALLEL) could keep both
    # TensorCores busy for tiny N; here we rely on dimension_semantics=("parallel",).

    def _run_fused(xf):
        grid_n = pl.cdiv(N, B)
        return pl.pallas_call(
            _contrast_fused_kernel,
            out_shape=jax.ShapeDtypeStruct((N, CHW), x.dtype),
            grid_spec=pltpu.PrefetchScalarGridSpec(
                num_scalar_prefetch=1,
                grid=(grid_n,),
                in_specs=[pl.BlockSpec((B, CHW), lambda n, s: (n, 0))],
                out_specs=pl.BlockSpec((B, CHW), lambda n, s: (n, 0)),
            ),
            compiler_params=pltpu.CompilerParams(
                dimension_semantics=("parallel",),
                vmem_limit_bytes=vmem_limit,
            ),
        )(factor_arr, xf)

    def _run_two_pass(xf):
        # One image no longer fits the block budget -> chunk over CHW.
        Bn = N if N <= 8 else 8
        row_budget = max(128, target_block_bytes // (bytes_per_px * max(8, Bn)))
        tile_f = _largest_aligned_divisor(HW, row_budget)   # divides HW: channel-pure
        n_chunks = CHW // tile_f
        grid_n = pl.cdiv(N, Bn)

        # Pass 1: per-image rounded gray mean, accumulated over channel-aligned chunks.
        means = pl.pallas_call(
            _make_mean_kernel(tile_f, HW),
            out_shape=jax.ShapeDtypeStruct((N, 1), jnp.float32),
            grid_spec=pltpu.PrefetchScalarGridSpec(
                num_scalar_prefetch=0,
                grid=(grid_n, n_chunks),
                in_specs=[pl.BlockSpec((Bn, tile_f), lambda i, j: (i, j))],
                out_specs=pl.BlockSpec((Bn, 1), lambda i, j: (i, 0)),
                scratch_shapes=[pltpu.VMEM((Bn, 1), jnp.float32)],
            ),
            compiler_params=pltpu.CompilerParams(
                dimension_semantics=("parallel", "arbitrary"),
                vmem_limit_bytes=vmem_limit,
            ),
        )(xf)

        # Pass 2: streamed blend; per-image means arrive as a tiny (N, 1) VMEM input.
        return pl.pallas_call(
            _blend_kernel,
            out_shape=jax.ShapeDtypeStruct((N, CHW), x.dtype),
            grid_spec=pltpu.PrefetchScalarGridSpec(
                num_scalar_prefetch=1,
                grid=(grid_n, n_chunks),
                in_specs=[pl.BlockSpec((Bn, 1), lambda i, j, s: (i, 0)),
                          pl.BlockSpec((Bn, tile_f), lambda i, j, s: (i, j))],
                out_specs=pl.BlockSpec((Bn, tile_f), lambda i, j, s: (i, j)),
            ),
            compiler_params=pltpu.CompilerParams(
                dimension_semantics=("parallel", "parallel"),
                vmem_limit_bytes=vmem_limit,
            ),
        )(factor_arr, means, xf)

    _run = _run_fused if B is not None else _run_two_pass

    # Skip path: concrete apply flag -> plain Python control flow (zero HBM traffic);
    # traced flag -> lax.cond fallback.
    take = None
    try:
        take = bool(apply_flag > 0.5)
    except (jax.errors.ConcretizationTypeError, TypeError):
        take = None

    if take is None:
        out2 = jax.lax.cond(jnp.asarray(apply_flag, jnp.float32) > 0.5,
                            _run, lambda xf: xf, x2)
    elif take:
        out2 = _run(x2)
    else:
        return x
    return out2.reshape(N, C, H, W)


if __name__ == "__main__":
    key = jax.random.PRNGKey(0)
    k_factor, k_p, k_x = jax.random.split(key, 3)

    # Deterministic "parameters": factor drawn at init, apply-coin drawn at forward time.
    factor = jax.random.uniform(k_factor) * (MAX_FACTOR - MIN_FACTOR) + MIN_FACTOR
    apply_flag = (jax.random.uniform(k_p) < P_DEFAULT).astype(jnp.float32)

    # Small RGB image batch, NCHW, integer pixel values in [0, 255] (PIL-like).
    x = jnp.round(jax.random.uniform(k_x, (2, 3, 16, 16), dtype=jnp.float32) * 255.0)

    out = contrast(x, factor, apply_flag)
    jax.block_until_ready(out)
    assert out.shape == x.shape and out.dtype == x.dtype

    # Pure-JAX reference (gray mean via exact per-channel sums, blend per module spec).
    HW = 16 * 16
    r_s = x[:, 0].sum(axis=(1, 2))
    g_s = x[:, 1].sum(axis=(1, 2))
    b_s = x[:, 2].sum(axis=(1, 2))
    mean = jnp.round((_LUMA_R * r_s + _LUMA_G * g_s + _LUMA_B * b_s)
                     / float(HW))[:, None, None, None]
    ref_on = jnp.clip(mean + factor * (x - mean), 0.0, 255.0)

    # Fused single-pass path.
    out_on = contrast(x, factor, jnp.float32(1.0))
    jax.block_until_ready(out_on)
    assert jnp.max(jnp.abs(out_on - ref_on)) < 1e-2

    # Two-pass (large-image) path, forced on the small input for coverage.
    out_tp = contrast(x, factor, jnp.float32(1.0), _force_two_pass=True)
    jax.block_until_ready(out_tp)
    assert jnp.max(jnp.abs(out_tp - ref_on)) < 1e-2

    # Skip path (concrete flag -> no kernel, x returned unchanged).
    out_off = contrast(x, factor, jnp.float32(0.0))
    jax.block_until_ready(out_off)
    assert jnp.array_equal(out_off, x)

    # Traced-flag path under jit (exercises the lax.cond branch).
    out_jit = jax.jit(contrast)(x, factor, jnp.float32(1.0))
    jax.block_until_ready(out_jit)
    assert jnp.max(jnp.abs(out_jit - ref_on)) < 1e-2

    print("KERNEL_OK")
</pallas_src>

<mosaic_0001>
module attributes {stable_mosaic.version = 11 : i64} {
  func.func @_contrast_fused_kernel(%arg0: i32, %arg1: memref<1xf32, #tpu.memory_space<smem>>, %arg2: memref<2x768xf32, #tpu.memory_space<vmem>>, %arg3: memref<2x768xf32, #tpu.memory_space<vmem>>) attributes {dimension_semantics = [#tpu.dimension_semantics<parallel>], iteration_bounds = array<i64: 1>, scalar_prefetch = 1 : i64, scratch_operands = 0 : i64, tpu.core_type = #tpu.core_type<tc>, window_params = [{transform_indices = @transform_0, window_bounds = array<i64: 2, 768>}, {transform_indices = @transform_1, window_bounds = array<i64: 2, 768>}]} {
    %c0 = arith.constant 0 : index
    %0 = memref.load %arg1[%c0] : memref<1xf32, #tpu.memory_space<smem>>
    %c0_0 = arith.constant 0 : index
    %c0_1 = arith.constant 0 : index
    %1 = vector.load %arg2[%c0_0, %c0_1] : memref<2x768xf32, #tpu.memory_space<vmem>>, vector<2x768xf32>
    %2 = vector.extract_strided_slice %1 {offsets = [0, 0], sizes = [2, 256], strides = [1, 1]} : vector<2x768xf32> to vector<2x256xf32>
    %cst = arith.constant dense<0.000000e+00> : vector<2xf32>
    %3 = vector.multi_reduction <add>, %2, %cst [1] : vector<2x256xf32> to vector<2xf32>
    %4 = vector.shape_cast %3 : vector<2xf32> to vector<2x1xf32>
    %5 = vector.extract_strided_slice %1 {offsets = [0, 256], sizes = [2, 256], strides = [1, 1]} : vector<2x768xf32> to vector<2x256xf32>
    %cst_2 = arith.constant dense<0.000000e+00> : vector<2xf32>
    %6 = vector.multi_reduction <add>, %5, %cst_2 [1] : vector<2x256xf32> to vector<2xf32>
    %7 = vector.shape_cast %6 : vector<2xf32> to vector<2x1xf32>
    %8 = vector.extract_strided_slice %1 {offsets = [0, 512], sizes = [2, 256], strides = [1, 1]} : vector<2x768xf32> to vector<2x256xf32>
    %cst_3 = arith.constant dense<0.000000e+00> : vector<2xf32>
    %9 = vector.multi_reduction <add>, %8, %cst_3 [1] : vector<2x256xf32> to vector<2xf32>
    %10 = vector.shape_cast %9 : vector<2xf32> to vector<2x1xf32>
    %cst_4 = arith.constant 2.990000e-01 : f32
    %11 = vector.broadcast %cst_4 : f32 to vector<2x1xf32>
    %12 = arith.mulf %11, %4 : vector<2x1xf32>
    %cst_5 = arith.constant 5.870000e-01 : f32
    %13 = vector.broadcast %cst_5 : f32 to vector<2x1xf32>
    %14 = arith.mulf %13, %7 : vector<2x1xf32>
    %15 = arith.addf %12, %14 : vector<2x1xf32>
    %cst_6 = arith.constant 1.140000e-01 : f32
    %16 = vector.broadcast %cst_6 : f32 to vector<2x1xf32>
    %17 = arith.mulf %16, %10 : vector<2x1xf32>
    %18 = arith.addf %15, %17 : vector<2x1xf32>
    %cst_7 = arith.constant 2.560000e+02 : f32
    %19 = vector.broadcast %cst_7 : f32 to vector<2x1xf32>
    %20 = arith.divf %18, %19 : vector<2x1xf32>
    %21 = math.roundeven %20 : vector<2x1xf32>
    %cst_8 = arith.constant 1.000000e+00 : f32
    %22 = arith.subf %cst_8, %0 : f32
    %23 = vector.broadcast %22 : f32 to vector<2x1xf32>
    %24 = arith.mulf %23, %21 : vector<2x1xf32>
    %25 = vector.broadcast %0 : f32 to vector<2x768xf32>
    %26 = arith.mulf %1, %25 : vector<2x768xf32>
    %27 = vector.broadcast %24 : vector<2x1xf32> to vector<2x768xf32>
    %28 = arith.addf %26, %27 : vector<2x768xf32>
    %cst_9 = arith.constant 0.000000e+00 : f32
    %cst_10 = arith.constant 2.550000e+02 : f32
    %29 = vector.broadcast %cst_9 : f32 to vector<2x768xf32>
    %30 = arith.maximumf %29, %28 : vector<2x768xf32>
    %31 = vector.broadcast %cst_10 : f32 to vector<2x768xf32>
    %32 = arith.minimumf %31, %30 : vector<2x768xf32>
    %c0_11 = arith.constant 0 : index
    %c0_12 = arith.constant 0 : index
    %33 = vector.load %arg3[%c0_11, %c0_12] : memref<2x768xf32, #tpu.memory_space<vmem>>, vector<2x768xf32>
    tpu.vector_store %arg3[%c0_11, %c0_12], %32 {strides = array<i32>} : memref<2x768xf32, #tpu.memory_space<vmem>>, vector<2x768xf32>,
    return
  }
  func.func @transform_0(%arg0: i32, %arg1: memref<1xf32, #tpu.memory_space<smem>>) -> (i32, i32) {
    %c0_i32 = arith.constant 0 : i32
    %c0_i32_0 = arith.constant 0 : i32
    return %arg0, %c0_i32 : i32, i32
  }
  func.func @transform_1(%arg0: i32, %arg1: memref<1xf32, #tpu.memory_space<smem>>) -> (i32, i32) {
    %c0_i32 = arith.constant 0 : i32
    %c0_i32_0 = arith.constant 0 : i32
    return %arg0, %c0_i32 : i32, i32
  }
}

</mosaic_0001>

<llo_original>
// kernel: tpu_custom_call.1
$region0: #{tpu_custom_call.1}
  #allocation0 [shape = 'u32[]', space=smem, size = 0x4, offset = 0x4, fixed_abs, tag = 'smem constant byte address 0x4 - core index']
  #allocation1 [shape = 'u32[144,128]{1,0:T(1,128)}', space=vmem, size = 0x12000, scoped, tag = 'internal scratch']
  #allocation2 [shape = 's32[1]{0}', space=sflag, size = 0x4, scoped, tag = 'scoped memory for tpu_custom_call.1']
  #allocation3 [shape = 'f32[1]{0:T(128)S(6)}', space=smem, size = 0x200, scoped, tag = 'prefetched SMEM operand 0']
  %s0 = inlined_call_operand.<no memory space> [shape: f32[1], index: 0, kind: input, shape index: {}]
  %s1 = inlined_call_operand.hbm [shape: f32[2,768], index: 1, kind: input, shape index: {}]
  %s2 = inlined_call_operand.hbm [shape: f32[2,768], index: 2, kind: output, shape index: {}]
  %s3 = sld [smem:[#allocation0]]
  $region18: #{tpu_custom_call.1} parent=0
    _
  %s5 = ssub.s32 1, %s3
  %s6 = scalar_select 0, %s5, %s3
  %7 = sst [smem:[#allocation3]] %s0
  $region1: #{tpu_custom_call.1} parent=0
    #allocation4 [shape = 'u8[6144]{0}', space=vmem, size = 0x1800, scoped, tag = 'input window, operand 1, single buffered']
    #allocation5 [shape = 's32[1]{0}', space=sflag, size = 0x4, scoped, tag = 'scoped memory for tpu_custom_call.1']
    #allocation6 [shape = 's32[1]{0}', space=sflag, size = 0x4, scoped, tag = 'scoped memory for tpu_custom_call.1']
    #allocation7 [shape = 'u8[6144]{0}', space=vmem, size = 0x1800, scoped, tag = 'output window, operand 0, single buffered']
    %8 = vsyncpa [#allocation5], 0
    %9 = vsyncpa [#allocation6], 0
    // Predicated region
    $region2: #{tpu_custom_call.1} parent=1 // pred_check
      _
    $region3: #{tpu_custom_call.1} parent=1 // pred_check_branch
      %11 = sbr.rel (0) target = $region5
    $region4: #{tpu_custom_call.1} parent=1 // pred_region
      %s13 = ssub.s32 192, 192
      %14 = vsyncadd [#allocation5], %s13
      %s16 = sshll.u32 [#allocation4], 4
      %s17 = int_to_ptr.vmem [resolvable:$true] %s16
      %19 = dma.hbm_to_vmem [thread:$0]  %s1, 192, %s17, [#allocation5]
    $region5: #{tpu_custom_call.1} parent=1 // pred_fallthru
      _
    // Predicated region
    $region6: #{tpu_custom_call.1} parent=1 // pred_check
      _
    $region7: #{tpu_custom_call.1} parent=1 // pred_check_branch
      %21 = sbr.rel (0) target = $region9
    $region8: #{tpu_custom_call.1} parent=1 // pred_region
      %22 = dma.done [#allocation5], 192
    $region9: #{tpu_custom_call.1} parent=1 // pred_fallthru
      _
    %s23 = sld [smem:[#allocation3]]
    %v24 = vld [vmem:[#allocation4] sm:$0xff]
    %v25 = vld [vmem:[#allocation4 + $0x8] sm:$0xf]
    %v28 = vunpack.c.l.s4 1983009808
    %v29 = vunpack.c.0.s8 %v28
    %v30 = vlaneseq
    %v31 = vshrl.u32 %v30, 7
    %v32 = vsub.s32 %v29, %v31
    %v33 = vrot.slane %v24, %v32
    %v34 = vcombine.high %v33, %v33
    %vm37 = vcmask 1041408
    %v38 = vsel %vm37, %v33, 0.0
    %v39 = vsel %vm37, %v34, 0.0
    %v40 = vadd.f32 %v38, %v39
    %41 = vadd.xlane.f32.xlu0 %v40
    %v42 = vpop.xlane.xlu0 %41
    %v43 = vcombine.high %v24, %v24
    %v45 = vunpack.c.l.s4 1983009808
    %v46 = vunpack.c.0.s8 %v45
    %v47 = vlaneseq
    %v48 = vshrl.u32 %v47, 7
    %v49 = vsub.s32 %v46, %v48
    %v50 = vrot.slane %v43, %v49
    %v51 = vcombine.high %v50, %v50
    %v54 = vsel %vm37, %v50, 0.0
    %v55 = vsel %vm37, %v51, 0.0
    %v56 = vadd.f32 %v54, %v55
    %57 = vadd.xlane.f32.xlu0 %v56
    %v58 = vpop.xlane.xlu0 %57
    %v61 = vunpack.c.l.s4 1983009808
    %v62 = vunpack.c.0.s8 %v61
    %v63 = vlaneseq
    %v64 = vshrl.u32 %v63, 7
    %v65 = vsub.s32 %v62, %v64
    %v66 = vrot.slane %v25, %v65
    %v67 = vcombine.high %v66, %v66
    %v70 = vsel %vm37, %v66, 0.0
    %v71 = vsel %vm37, %v67, 0.0
    %v72 = vadd.f32 %v70, %v71
    %73 = vadd.xlane.f32.xlu0 %v72
    %v74 = vpop.xlane.xlu0 %73
    %v75 = vmul.f32 %v42, 0.299
    %v76 = vmul.f32 %v58, 0.587
    %v77 = vadd.f32 %v75, %v76
    %v78 = vmul.f32 %v74, 0.114
    %v79 = vadd.f32 %v77, %v78
    %v80 = vrcp.pop 256.0
    %v81 = vmul.f32 %v79, %v80
    %v82 = vround.ne.pseudo %v81
    %s83 = ssub.f32 1.0, %s23
    %v84 = vstv %s83
    %v85 = vmul.f32 %v84, %v82
    %v86 = vstv %s23
    %v87 = vmul.f32 %v24, %v86
    %v88 = vmul.f32 %v25, %v86
    %v91 = vunpack.c.l.s4 269488144
    %v92 = vunpack.c.0.s8 %v91
    %v93 = vlaneseq
    %v94 = vshrl.u32 %v93, 7
    %v95 = vsub.s32 %v92, %v94
    %v96 = vrot.slane %v85, %v95
    %v98 = vadd.f32 %v87, %v96
    %v99 = vadd.f32 %v88, %v96
    %v100 = vmax.f32 %v98, 0.0
    %v101 = vmax.f32 %v99, 0.0
    %v102 = vmin.f32 %v100, 255.0
    %v103 = vmin.f32 %v101, 255.0
    %104 = vst [vmem:[#allocation7] sm:$0xff] %v102
    %105 = vst [vmem:[#allocation7 + $0x8] sm:$0xf] %v103
    // Predicated region
    $region10: #{tpu_custom_call.1} parent=1 // pred_check
      _
    $region11: #{tpu_custom_call.1} parent=1 // pred_check_branch
      %107 = sbr.rel (0) target = $region13
    $region12: #{tpu_custom_call.1} parent=1 // pred_region
      %s109 = ssub.s32 192, 192
      %110 = vsyncadd [#allocation6], %s109
      %s112 = sshll.u32 [#allocation7], 4
      %s113 = int_to_ptr.vmem [resolvable:$true] %s112
      %115 = dma.vmem_to_hbm [thread:$0]  %s113, 192, %s2, [#allocation6]
    $region13: #{tpu_custom_call.1} parent=1 // pred_fallthru
      _
    // Predicated region
    $region14: #{tpu_custom_call.1} parent=1 // pred_check
      _
    $region15: #{tpu_custom_call.1} parent=1 // pred_check_branch
      %117 = sbr.rel (0) target = $region17
    $region16: #{tpu_custom_call.1} parent=1 // pred_region
      %118 = dma.done [#allocation6], 192
    $region17: #{tpu_custom_call.1} parent=1 // pred_fallthru
      _
    %119 = vsyncpa [#allocation5], 1
    %120 = vsyncpa [#allocation6], 1

</llo_original>
